<compile_context>
chip_gen: v6e
topology: v6e:2x2x1
jax: 0.10.0
libtpu: 0.0.40
codegen_flags: <defaults>
</compile_context>

<pallas_src>
import jax
import jax.numpy as jnp
from jax.experimental import pallas as pl
from jax.experimental.pallas import tpu as pltpu


def mel_predictor_kernel(x_ref, w1_ref, b1_ref, w2_ref, b2_ref, w3_ref, b3_ref,
                         o_ref):
    # x_ref:  (1, D_in, Tt)  one batch element, one time tile, native dtype
    # w*_ref: PyTorch layout (out, in), full arrays, compute dtype, VMEM-resident
    # b*_ref: (out, 1) f32 columns, broadcast over the time tile
    # o_ref:  (1, M, Tt)
    cdt = w1_ref.dtype                      # matmul compute dtype (bf16 or f32)
    x = x_ref[0].astype(cdt)                # in-VMEM cast (VPU, hides under MXU)

    # Linear1 + ReLU (dropout = identity in eval mode)
    h1 = jnp.dot(w1_ref[...], x, preferred_element_type=jnp.float32)
    h1 = jnp.maximum(h1 + b1_ref[...], 0.0)              # f32 epilogue

    # Linear2 + ReLU
    h2 = jnp.dot(w2_ref[...], h1.astype(cdt), preferred_element_type=jnp.float32)
    h2 = jnp.maximum(h2 + b2_ref[...], 0.0)              # f32 epilogue

    # Linear3 (no activation)
    out = jnp.dot(w3_ref[...], h2.astype(cdt), preferred_element_type=jnp.float32)
    o_ref[0] = (out + b3_ref[...]).astype(o_ref.dtype)


def mel_predictor_forward(x, params, *, t_tile=None, use_bf16=True,
                          out_dtype=None, vmem_limit_bytes=None):
    """x: (B, input_dim, T) -> (B, mel_dim, T)."""
    w1, b1, w2, b2, w3, b3 = params          # PyTorch Linear layout (out, in)
    B, D_in, T = x.shape
    H = w1.shape[0]
    M = w3.shape[0]
    if out_dtype is None:
        out_dtype = x.dtype

    # Time tiling.  No whole-array pad: the last block may extend past T and
    # Pallas masks the out-of-bounds output columns; the matching OOB input
    # columns only ever feed those dropped columns (column-local math).
    if t_tile is None:
        t_tile = 512
    if T >= t_tile:
        block_t = t_tile
    elif T <= 128:
        block_t = T                                   # full-dim single block
    else:
        block_t = ((T + 127) // 128) * 128            # lane-dense single block
    num_t = pl.cdiv(T, block_t)

    cdt = jnp.bfloat16 if use_bf16 else x.dtype
    # Weights are tiny -> cast wrapper-side; x streams in its native dtype and
    # is cast per-tile inside the kernel (no standalone HBM convert pass).
    w1_k, w2_k, w3_k = w1.astype(cdt), w2.astype(cdt), w3.astype(cdt)
    # Biases as (out, 1) f32 columns so they broadcast over the time tile.
    b1c = b1.reshape(H, 1).astype(jnp.float32)
    b2c = b2.reshape(H, 1).astype(jnp.float32)
    b3c = b3.reshape(M, 1).astype(jnp.float32)

    cp_kwargs = dict(dimension_semantics=("parallel", "parallel"))
    if vmem_limit_bytes is not None:
        cp_kwargs["vmem_limit_bytes"] = vmem_limit_bytes

    return pl.pallas_call(
        mel_predictor_kernel,
        out_shape=jax.ShapeDtypeStruct((B, M, T), out_dtype),
        grid_spec=pltpu.PrefetchScalarGridSpec(
            num_scalar_prefetch=0,
            grid=(B, num_t),
            in_specs=[
                pl.BlockSpec((1, D_in, block_t), lambda b, t: (b, 0, t)),  # x
                pl.BlockSpec((H, D_in), lambda b, t: (0, 0)),              # w1
                pl.BlockSpec((H, 1), lambda b, t: (0, 0)),                 # b1
                pl.BlockSpec((H, H), lambda b, t: (0, 0)),                 # w2
                pl.BlockSpec((H, 1), lambda b, t: (0, 0)),                 # b2
                pl.BlockSpec((M, H), lambda b, t: (0, 0)),                 # w3
                pl.BlockSpec((M, 1), lambda b, t: (0, 0)),                 # b3
            ],
            out_specs=pl.BlockSpec((1, M, block_t), lambda b, t: (b, 0, t)),
        ),
        compiler_params=pltpu.CompilerParams(**cp_kwargs),
    )(x, w1_k, b1c, w2_k, b2c, w3_k, b3c)


def init_params(key, input_dim, hidden_dim, mel_dim):
    """Deterministic synthetic parameters, PyTorch nn.Linear layout (out, in)."""
    ks = jax.random.split(key, 6)
    s1 = 1.0 / jnp.sqrt(input_dim)
    s2 = 1.0 / jnp.sqrt(hidden_dim)
    w1 = jax.random.uniform(ks[0], (hidden_dim, input_dim), jnp.float32, -s1, s1)
    b1 = jax.random.uniform(ks[1], (hidden_dim,), jnp.float32, -s1, s1)
    w2 = jax.random.uniform(ks[2], (hidden_dim, hidden_dim), jnp.float32, -s2, s2)
    b2 = jax.random.uniform(ks[3], (hidden_dim,), jnp.float32, -s2, s2)
    w3 = jax.random.uniform(ks[4], (mel_dim, hidden_dim), jnp.float32, -s2, s2)
    b3 = jax.random.uniform(ks[5], (mel_dim,), jnp.float32, -s2, s2)
    return (w1, b1, w2, b2, w3, b3)


def reference_forward(x, params):
    """Pure-JAX reference mirroring the PyTorch module (eval mode)."""
    w1, b1, w2, b2, w3, b3 = params
    h = jnp.transpose(x, (0, 2, 1))                       # (B, T, D_in)
    h = jax.nn.relu(h @ w1.T + b1)
    h = jax.nn.relu(h @ w2.T + b2)
    h = h @ w3.T + b3
    return jnp.transpose(h, (0, 2, 1))                    # (B, mel, T)


if __name__ == "__main__":
    key = jax.random.PRNGKey(0)
    k_x, k_x2, k_x3, k_p = jax.random.split(key, 4)

    B, INPUT_DIM, T = 2, 32, 16
    HIDDEN_DIM, MEL_DIM = 64, 80

    params = init_params(k_p, INPUT_DIM, HIDDEN_DIM, MEL_DIM)

    # --- test 1: small shape, f32 matmuls, tight tolerance -------------------
    x = jax.random.normal(k_x, (B, INPUT_DIM, T), jnp.float32)
    out = jax.block_until_ready(mel_predictor_forward(x, params, use_bf16=False))
    ref = reference_forward(x, params)
    assert out.shape == (B, MEL_DIM, T), out.shape
    assert jnp.allclose(out, ref, atol=1e-5, rtol=1e-5), "f32 mismatch vs reference"

    # --- test 2: same shape, bf16 matmul operands (f32 accumulation) ---------
    # Note: bf16 operands differ numerically from PyTorch's f32 matmuls; the
    # 2e-2 tolerance is appropriate for mel features.
    out_bf = jax.block_until_ready(mel_predictor_forward(x, params, use_bf16=True))
    assert jnp.allclose(out_bf, ref, atol=2e-2, rtol=2e-2), "bf16 mismatch vs reference"

    # --- test 3: non-divisible T, single ragged lane-dense block (384 > 300) -
    T2 = 300
    x2 = jax.random.normal(k_x2, (B, INPUT_DIM, T2), jnp.float32)
    out2 = jax.block_until_ready(mel_predictor_forward(x2, params, use_bf16=True))
    ref2 = reference_forward(x2, params)
    assert out2.shape == (B, MEL_DIM, T2), out2.shape
    assert jnp.allclose(out2, ref2, atol=2e-2, rtol=2e-2), "ragged-single mismatch"

    # --- test 4: multi-tile grid with ragged last block (no pad, no slice) ---
    T3 = 640
    x3 = jax.random.normal(k_x3, (B, INPUT_DIM, T3), jnp.float32)
    out3 = jax.block_until_ready(
        mel_predictor_forward(x3, params, t_tile=256, use_bf16=True))
    ref3 = reference_forward(x3, params)
    assert out3.shape == (B, MEL_DIM, T3), out3.shape
    assert jnp.allclose(out3, ref3, atol=2e-2, rtol=2e-2), "ragged-multi mismatch"

    print("KERNEL_OK")
</pallas_src>

<mosaic_0001>
module attributes {stable_mosaic.version = 11 : i64} {
  func.func @mel_predictor_kernel(%arg0: i32, %arg1: i32, %arg2: memref<1x32x16xf32, #tpu.memory_space<vmem>>, %arg3: memref<64x32xf32, #tpu.memory_space<vmem>>, %arg4: memref<64x1xf32, #tpu.memory_space<vmem>>, %arg5: memref<64x64xf32, #tpu.memory_space<vmem>>, %arg6: memref<64x1xf32, #tpu.memory_space<vmem>>, %arg7: memref<80x64xf32, #tpu.memory_space<vmem>>, %arg8: memref<80x1xf32, #tpu.memory_space<vmem>>, %arg9: memref<1x80x16xf32, #tpu.memory_space<vmem>>) attributes {dimension_semantics = [#tpu.dimension_semantics<parallel>, #tpu.dimension_semantics<parallel>], iteration_bounds = array<i64: 2, 1>, scalar_prefetch = 0 : i64, scratch_operands = 0 : i64, tpu.core_type = #tpu.core_type<tc>, window_params = [{transform_indices = @transform_0, window_bounds = array<i64: 1, 32, 16>}, {pipeline_mode = #tpu.pipeline_mode<synchronous>, transform_indices = @transform_1, window_bounds = array<i64: 64, 32>}, {pipeline_mode = #tpu.pipeline_mode<synchronous>, transform_indices = @transform_2, window_bounds = array<i64: 64, 1>}, {pipeline_mode = #tpu.pipeline_mode<synchronous>, transform_indices = @transform_3, window_bounds = array<i64: 64, 64>}, {pipeline_mode = #tpu.pipeline_mode<synchronous>, transform_indices = @transform_4, window_bounds = array<i64: 64, 1>}, {pipeline_mode = #tpu.pipeline_mode<synchronous>, transform_indices = @transform_5, window_bounds = array<i64: 80, 64>}, {pipeline_mode = #tpu.pipeline_mode<synchronous>, transform_indices = @transform_6, window_bounds = array<i64: 80, 1>}, {transform_indices = @transform_7, window_bounds = array<i64: 1, 80, 16>}]} {
    %c0 = arith.constant 0 : index
    %c0_0 = arith.constant 0 : index
    %c0_1 = arith.constant 0 : index
    %0 = vector.load %arg2[%c0, %c0_0, %c0_1] : memref<1x32x16xf32, #tpu.memory_space<vmem>>, vector<1x32x16xf32>
    %1 = vector.shape_cast %0 : vector<1x32x16xf32> to vector<32x16xf32>
    %c0_2 = arith.constant 0 : index
    %c0_3 = arith.constant 0 : index
    %2 = vector.load %arg3[%c0_2, %c0_3] : memref<64x32xf32, #tpu.memory_space<vmem>>, vector<64x32xf32>
    %cst = arith.constant dense<0.000000e+00> : vector<64x16xf32>
    %3 = tpu.matmul %2, %1, %cst {dimension_numbers = #tpu.dot_dimension_numbers<[1], [0], [0], [1], [0, 0, 1, 1], [], []>} : vector<64x32xf32>, vector<32x16xf32>, vector<64x16xf32> -> vector<64x16xf32>
    %c0_4 = arith.constant 0 : index
    %c0_5 = arith.constant 0 : index
    %4 = vector.load %arg4[%c0_4, %c0_5] : memref<64x1xf32, #tpu.memory_space<vmem>>, vector<64x1xf32>
    %5 = vector.broadcast %4 : vector<64x1xf32> to vector<64x16xf32>
    %6 = arith.addf %3, %5 : vector<64x16xf32>
    %cst_6 = arith.constant 0.000000e+00 : f32
    %7 = vector.broadcast %cst_6 : f32 to vector<64x16xf32>
    %8 = arith.maximumf %6, %7 : vector<64x16xf32>
    %c0_7 = arith.constant 0 : index
    %c0_8 = arith.constant 0 : index
    %9 = vector.load %arg5[%c0_7, %c0_8] : memref<64x64xf32, #tpu.memory_space<vmem>>, vector<64x64xf32>
    %cst_9 = arith.constant dense<0.000000e+00> : vector<64x16xf32>
    %10 = tpu.matmul %9, %8, %cst_9 {dimension_numbers = #tpu.dot_dimension_numbers<[1], [0], [0], [1], [0, 0, 1, 1], [], []>} : vector<64x64xf32>, vector<64x16xf32>, vector<64x16xf32> -> vector<64x16xf32>
    %c0_10 = arith.constant 0 : index
    %c0_11 = arith.constant 0 : index
    %11 = vector.load %arg6[%c0_10, %c0_11] : memref<64x1xf32, #tpu.memory_space<vmem>>, vector<64x1xf32>
    %12 = vector.broadcast %11 : vector<64x1xf32> to vector<64x16xf32>
    %13 = arith.addf %10, %12 : vector<64x16xf32>
    %cst_12 = arith.constant 0.000000e+00 : f32
    %14 = vector.broadcast %cst_12 : f32 to vector<64x16xf32>
    %15 = arith.maximumf %13, %14 : vector<64x16xf32>
    %c0_13 = arith.constant 0 : index
    %c0_14 = arith.constant 0 : index
    %16 = vector.load %arg7[%c0_13, %c0_14] : memref<80x64xf32, #tpu.memory_space<vmem>>, vector<80x64xf32>
    %cst_15 = arith.constant dense<0.000000e+00> : vector<80x16xf32>
    %17 = tpu.matmul %16, %15, %cst_15 {dimension_numbers = #tpu.dot_dimension_numbers<[1], [0], [0], [1], [0, 0, 1, 1], [], []>} : vector<80x64xf32>, vector<64x16xf32>, vector<80x16xf32> -> vector<80x16xf32>
    %c0_16 = arith.constant 0 : index
    %c0_17 = arith.constant 0 : index
    %18 = vector.load %arg8[%c0_16, %c0_17] : memref<80x1xf32, #tpu.memory_space<vmem>>, vector<80x1xf32>
    %19 = vector.broadcast %18 : vector<80x1xf32> to vector<80x16xf32>
    %20 = arith.addf %17, %19 : vector<80x16xf32>
    %c0_18 = arith.constant 0 : index
    %c0_19 = arith.constant 0 : index
    %c0_20 = arith.constant 0 : index
    %21 = vector.load %arg9[%c0_18, %c0_19, %c0_20] : memref<1x80x16xf32, #tpu.memory_space<vmem>>, vector<1x80x16xf32>
    %22 = vector.shape_cast %21 : vector<1x80x16xf32> to vector<80x16xf32>
    %23 = vector.shape_cast %20 : vector<80x16xf32> to vector<1x80x16xf32>
    tpu.vector_store %arg9[%c0_18, %c0_19, %c0_20], %23 {strides = array<i32>} : memref<1x80x16xf32, #tpu.memory_space<vmem>>, vector<1x80x16xf32>,
    return
  }
  func.func @transform_0(%arg0: i32, %arg1: i32) -> (i32, i32, i32) {
    %c0_i32 = arith.constant 0 : i32
    %c0_i32_0 = arith.constant 0 : i32
    return %arg0, %c0_i32, %arg1 : i32, i32, i32
  }
  func.func @transform_1(%arg0: i32, %arg1: i32) -> (i32, i32) {
    %c0_i32 = arith.constant 0 : i32
    %c0_i32_0 = arith.constant 0 : i32
    %c0_i32_1 = arith.constant 0 : i32
    return %c0_i32, %c0_i32_0 : i32, i32
  }
  func.func @transform_2(%arg0: i32, %arg1: i32) -> (i32, i32) {
    %c0_i32 = arith.constant 0 : i32
    %c0_i32_0 = arith.constant 0 : i32
    %c0_i32_1 = arith.constant 0 : i32
    return %c0_i32, %c0_i32_0 : i32, i32
  }
  func.func @transform_3(%arg0: i32, %arg1: i32) -> (i32, i32) {
    %c0_i32 = arith.constant 0 : i32
    %c0_i32_0 = arith.constant 0 : i32
    %c0_i32_1 = arith.constant 0 : i32
    return %c0_i32, %c0_i32_0 : i32, i32
  }
  func.func @transform_4(%arg0: i32, %arg1: i32) -> (i32, i32) {
    %c0_i32 = arith.constant 0 : i32
    %c0_i32_0 = arith.constant 0 : i32
    %c0_i32_1 = arith.constant 0 : i32
    return %c0_i32, %c0_i32_0 : i32, i32
  }
  func.func @transform_5(%arg0: i32, %arg1: i32) -> (i32, i32) {
    %c0_i32 = arith.constant 0 : i32
    %c0_i32_0 = arith.constant 0 : i32
    %c0_i32_1 = arith.constant 0 : i32
    return %c0_i32, %c0_i32_0 : i32, i32
  }
  func.func @transform_6(%arg0: i32, %arg1: i32) -> (i32, i32) {
    %c0_i32 = arith.constant 0 : i32
    %c0_i32_0 = arith.constant 0 : i32
    %c0_i32_1 = arith.constant 0 : i32
    return %c0_i32, %c0_i32_0 : i32, i32
  }
  func.func @transform_7(%arg0: i32, %arg1: i32) -> (i32, i32, i32) {
    %c0_i32 = arith.constant 0 : i32
    %c0_i32_0 = arith.constant 0 : i32
    return %arg0, %c0_i32, %arg1 : i32, i32, i32
  }
}

</mosaic_0001>

<llo_original>
// kernel: tpu_custom_call.1
$region0: #{tpu_custom_call.1}
  #allocation0 [shape = 'u32[]', space=smem, size = 0x4, offset = 0x4, fixed_abs, tag = 'smem constant byte address 0x4 - core index']
  #allocation1 [shape = 'u32[144,128]{1,0:T(1,128)}', space=vmem, size = 0x12000, scoped, tag = 'internal scratch']
  %s0 = inlined_call_operand.vmem [shape: f32[2,32,16], index: 0, kind: input, shape index: {}]
  %s1 = inlined_call_operand.vmem [shape: f32[64,32], index: 1, kind: input, shape index: {}]
  %s2 = inlined_call_operand.vmem [shape: f32[64,1], index: 2, kind: input, shape index: {}]
  %s3 = inlined_call_operand.vmem [shape: f32[64,64], index: 3, kind: input, shape index: {}]
  %s4 = inlined_call_operand.vmem [shape: f32[64,1], index: 4, kind: input, shape index: {}]
  %s5 = inlined_call_operand.vmem [shape: f32[80,64], index: 5, kind: input, shape index: {}]
  %s6 = inlined_call_operand.vmem [shape: f32[80,1], index: 6, kind: input, shape index: {}]
  %s7 = inlined_call_operand.vmem [shape: f32[2,80,16], index: 7, kind: output, shape index: {}]
  %s8 = sld [smem:[#allocation0]]
  $region61: #{tpu_custom_call.1} parent=0
    _
  %s10 = ssub.s32 1, %s8
  %s11 = scalar_select 0, %s10, %s8
  loop: start=0, step=1, limit=4
  $region2: #{tpu_custom_call.1} parent=0 // loop_pre_header
    _
  $region3: #{tpu_custom_call.1} parent=0 // loop_header
    %s13 = sphi 0, %s17
    %p14 = scmp.ge.s32.totalorder %s13, 4
    %s20 = sphi 0, %s32
    %s21 = sphi 0, %s28
    %s22 = sphi 0, %s20
    %s23 = sphi 0, %s21
    %s24 = sphi 0, %s22
    %s25 = sphi 0, %s23
    %s37 = sphi 0, %s39
    %s40 = sphi 0, %s37
    %s41 = sphi 0, %s40
    %s57 = sphi 0, %s41
    %s61 = sphi 0, %s61
    %s63 = sphi 0, %s61
    %s64 = sphi 0, %s63
    %s78 = sphi 0, %s64
    %s82 = sphi 0, %s82
    %s84 = sphi 0, %s82
    %s85 = sphi 0, %s84
    %s99 = sphi 0, %s85
    %s103 = sphi 0, %s103
    %s105 = sphi 0, %s103
    %s106 = sphi 0, %s105
    %s120 = sphi 0, %s106
    %s124 = sphi 0, %s124
    %s126 = sphi 0, %s124
    %s127 = sphi 0, %s126
    %s141 = sphi 0, %s127
    %s145 = sphi 0, %s145
    %s147 = sphi 0, %s145
    %s148 = sphi 0, %s147
    %s162 = sphi 0, %s148
    %s166 = sphi 0, %s166
    %s168 = sphi 0, %s166
    %s169 = sphi 0, %s168
    %s183 = sphi 0, %s169
    %s191 = sphi 0, %s193
    %s194 = sphi 0, %s191
    %s195 = sphi 0, %s194
    %s211 = sphi 0, %s195
  $region4: #{tpu_custom_call.1} parent=0 // loop_header_branch
    %16 = sbr.rel (%p14) target = $region8
  $region5: #{tpu_custom_call.1} parent=0 // loop_body
    %s18 = ssub.s32 %s13, 1
    %s19 = ssub.s32 %s13, 2
    %s26 = sadd.s32 1, %s21
    %p27 = scmp.ge.s32.totalorder %s26, 1
    %s28 = scalar_select %p27, 0, %s26
    %s29 = sadd.s32 1, %s20
    %s30 = scalar_select %p27, %s29, %s20
    %p31 = scmp.ge.s32.totalorder %s30, 2
    %s32 = scalar_select %p31, 0, %s30
    %s33 = ssub.s32 %s20, %s32
    %s34 = ssub.s32 %s21, %s28
    %s35 = sor.u32 %s33, %s34
    %p36 = scmp.eq.s32.totalorder %s35, 0
    %s38 = sadd.s32 %s37, 1
    %s39 = scalar_select %p36, %s37, %s38
    %p42 = pneg %p36
    %p43 = scmp.eq.s32.totalorder %s13, 1
    %p44 = por %p42, %p43
    %p45 = scmp.ne.s32.totalorder %s37, %s40
    %p46 = scmp.eq.s32.totalorder %s13, 0
    %p47 = por %p45, %p46
    %p48 = scmp.ne.s32.totalorder %s37, %s40
    %p49 = scmp.eq.s32.totalorder %s18, 1
    %p50 = por %p48, %p49
    %p51 = scmp.ne.s32.totalorder %s40, %s41
    %p52 = scmp.eq.s32.totalorder %s18, 0
    %p53 = por %p51, %p52
    %p54 = scmp.ne.s32.totalorder %s40, %s41
    %p55 = scmp.eq.s32.totalorder %s19, 1
    %p56 = por %p54, %p55
    %p58 = scmp.ne.s32.totalorder %s41, %s57
    %p59 = scmp.eq.s32.totalorder %s19, 0
    %p60 = por %p58, %p59
    %s62 = sadd.s32 %s61, 1
    %p65 = scmp.eq.s32.totalorder %s13, 1
    %p66 = scmp.ne.s32.totalorder %s61, %s63
    %p67 = scmp.eq.s32.totalorder %s13, 0
    %p68 = por %p66, %p67
    %p69 = scmp.ne.s32.totalorder %s61, %s63
    %p70 = scmp.eq.s32.totalorder %s18, 1
    %p71 = por %p69, %p70
    %p72 = scmp.ne.s32.totalorder %s63, %s64
    %p73 = scmp.eq.s32.totalorder %s18, 0
    %p74 = por %p72, %p73
    %p75 = scmp.ne.s32.totalorder %s63, %s64
    %p76 = scmp.eq.s32.totalorder %s19, 1
    %p77 = por %p75, %p76
    %p79 = scmp.ne.s32.totalorder %s64, %s78
    %p80 = scmp.eq.s32.totalorder %s19, 0
    %p81 = por %p79, %p80
    %s83 = sadd.s32 %s82, 1
    %p86 = scmp.eq.s32.totalorder %s13, 1
    %p87 = scmp.ne.s32.totalorder %s82, %s84
    %p88 = scmp.eq.s32.totalorder %s13, 0
    %p89 = por %p87, %p88
    %p90 = scmp.ne.s32.totalorder %s82, %s84
    %p91 = scmp.eq.s32.totalorder %s18, 1
    %p92 = por %p90, %p91
    %p93 = scmp.ne.s32.totalorder %s84, %s85
    %p94 = scmp.eq.s32.totalorder %s18, 0
    %p95 = por %p93, %p94
    %p96 = scmp.ne.s32.totalorder %s84, %s85
    %p97 = scmp.eq.s32.totalorder %s19, 1
    %p98 = por %p96, %p97
    %p100 = scmp.ne.s32.totalorder %s85, %s99
    %p101 = scmp.eq.s32.totalorder %s19, 0
    %p102 = por %p100, %p101
    %s104 = sadd.s32 %s103, 1
    %p107 = scmp.eq.s32.totalorder %s13, 1
    %p108 = scmp.ne.s32.totalorder %s103, %s105
    %p109 = scmp.eq.s32.totalorder %s13, 0
    %p110 = por %p108, %p109
    %p111 = scmp.ne.s32.totalorder %s103, %s105
    %p112 = scmp.eq.s32.totalorder %s18, 1
    %p113 = por %p111, %p112
    %p114 = scmp.ne.s32.totalorder %s105, %s106
    %p115 = scmp.eq.s32.totalorder %s18, 0
    %p116 = por %p114, %p115
    %p117 = scmp.ne.s32.totalorder %s105, %s106
    %p118 = scmp.eq.s32.totalorder %s19, 1
    %p119 = por %p117, %p118
    %p121 = scmp.ne.s32.totalorder %s106, %s120
    %p122 = scmp.eq.s32.totalorder %s19, 0
    %p123 = por %p121, %p122
    %s125 = sadd.s32 %s124, 1
    %p128 = scmp.eq.s32.totalorder %s13, 1
    %p129 = scmp.ne.s32.totalorder %s124, %s126
    %p130 = scmp.eq.s32.totalorder %s13, 0
    %p131 = por %p129, %p130
    %p132 = scmp.ne.s32.totalorder %s124, %s126
    %p133 = scmp.eq.s32.totalorder %s18, 1
    %p134 = por %p132, %p133
    %p135 = scmp.ne.s32.totalorder %s126, %s127
    %p136 = scmp.eq.s32.totalorder %s18, 0
    %p137 = por %p135, %p136
    %p138 = scmp.ne.s32.totalorder %s126, %s127
    %p139 = scmp.eq.s32.totalorder %s19, 1
    %p140 = por %p138, %p139
    %p142 = scmp.ne.s32.totalorder %s127, %s141
    %p143 = scmp.eq.s32.totalorder %s19, 0
    %p144 = por %p142, %p143
    %s146 = sadd.s32 %s145, 1
    %p149 = scmp.eq.s32.totalorder %s13, 1
    %p150 = scmp.ne.s32.totalorder %s145, %s147
    %p151 = scmp.eq.s32.totalorder %s13, 0
    %p152 = por %p150, %p151
    %p153 = scmp.ne.s32.totalorder %s145, %s147
    %p154 = scmp.eq.s32.totalorder %s18, 1
    %p155 = por %p153, %p154
    %p156 = scmp.ne.s32.totalorder %s147, %s148
    %p157 = scmp.eq.s32.totalorder %s18, 0
    %p158 = por %p156, %p157
    %p159 = scmp.ne.s32.totalorder %s147, %s148
    %p160 = scmp.eq.s32.totalorder %s19, 1
    %p161 = por %p159, %p160
    %p163 = scmp.ne.s32.totalorder %s148, %s162
    %p164 = scmp.eq.s32.totalorder %s19, 0
    %p165 = por %p163, %p164
    %s167 = sadd.s32 %s166, 1
    %p170 = scmp.eq.s32.totalorder %s13, 1
    %p171 = scmp.ne.s32.totalorder %s166, %s168
    %p172 = scmp.eq.s32.totalorder %s13, 0
    %p173 = por %p171, %p172
    %p174 = scmp.ne.s32.totalorder %s166, %s168
    %p175 = scmp.eq.s32.totalorder %s18, 1
    %p176 = por %p174, %p175
    %p177 = scmp.ne.s32.totalorder %s168, %s169
    %p178 = scmp.eq.s32.totalorder %s18, 0
    %p179 = por %p177, %p178
    %p180 = scmp.ne.s32.totalorder %s168, %s169
    %p181 = scmp.eq.s32.totalorder %s19, 1
    %p182 = por %p180, %p181
    %p184 = scmp.ne.s32.totalorder %s169, %s183
    %p185 = scmp.eq.s32.totalorder %s19, 0
    %p186 = por %p184, %p185
    %s187 = ssub.s32 %s20, %s32
    %s188 = ssub.s32 %s21, %s28
    %s189 = sor.u32 %s187, %s188
    %p190 = scmp.eq.s32.totalorder %s189, 0
    %s192 = sadd.s32 %s191, 1
    %s193 = scalar_select %p190, %s191, %s192
    %p196 = pneg %p190
    %p197 = scmp.eq.s32.totalorder %s13, 1
    %p198 = por %p196, %p197
    %p199 = scmp.ne.s32.totalorder %s191, %s194
    %p200 = scmp.eq.s32.totalorder %s13, 0
    %p201 = por %p199, %p200
    %p202 = scmp.ne.s32.totalorder %s191, %s194
    %p203 = scmp.eq.s32.totalorder %s18, 1
    %p204 = por %p202, %p203
    %p205 = scmp.ne.s32.totalorder %s194, %s195
    %p206 = scmp.eq.s32.totalorder %s18, 0
    %p207 = por %p205, %p206
    %p208 = scmp.ne.s32.totalorder %s194, %s195
    %p209 = scmp.eq.s32.totalorder %s19, 1
    %p210 = por %p208, %p209
    %p212 = scmp.ne.s32.totalorder %s195, %s211
    %p213 = scmp.eq.s32.totalorder %s19, 0
    %p214 = por %p212, %p213
    %p215 = scmp.le.s32.totalorder 1, %s13
    %p216 = scmp.lt.s32.totalorder %s13, 3
    %p217 = pnand %p215, %p216
    %p218 = pneg %p217
    // Predicated region
    $region9: #{tpu_custom_call.1} parent=5 // pred_check
      _
    $region10: #{tpu_custom_call.1} parent=5 // pred_check_branch
      %220 = sbr.rel (%p217) target = $region12
    $region11: #{tpu_custom_call.1} parent=5 // pred_region
      %s221 = ssub.s32 %s13, 1
      // Predicated region
      $region13: #{tpu_custom_call.1} parent=11 // pred_check
        %p222 = pneg %p74
      $region14: #{tpu_custom_call.1} parent=11 // pred_check_branch
        %224 = sbr.rel (%p222) target = $region16
      $region15: #{tpu_custom_call.1} parent=11 // pred_region
        _
      $region16: #{tpu_custom_call.1} parent=11 // pred_fallthru
        _
      // Predicated region
      $region17: #{tpu_custom_call.1} parent=11 // pred_check
        %p225 = pneg %p95
      $region18: #{tpu_custom_call.1} parent=11 // pred_check_branch
        %227 = sbr.rel (%p225) target = $region20
      $region19: #{tpu_custom_call.1} parent=11 // pred_region
        _
      $region20: #{tpu_custom_call.1} parent=11 // pred_fallthru
        _
      // Predicated region
      $region21: #{tpu_custom_call.1} parent=11 // pred_check
        %p228 = pneg %p116
      $region22: #{tpu_custom_call.1} parent=11 // pred_check_branch
        %230 = sbr.rel (%p228) target = $region24
      $region23: #{tpu_custom_call.1} parent=11 // pred_region
        _
      $region24: #{tpu_custom_call.1} parent=11 // pred_fallthru
        _
      // Predicated region
      $region25: #{tpu_custom_call.1} parent=11 // pred_check
        %p231 = pneg %p137
      $region26: #{tpu_custom_call.1} parent=11 // pred_check_branch
        %233 = sbr.rel (%p231) target = $region28
      $region27: #{tpu_custom_call.1} parent=11 // pred_region
        _
      $region28: #{tpu_custom_call.1} parent=11 // pred_fallthru
        _
      // Predicated region
      $region29: #{tpu_custom_call.1} parent=11 // pred_check
        %p234 = pneg %p158
      $region30: #{tpu_custom_call.1} parent=11 // pred_check_branch
        %236 = sbr.rel (%p234) target = $region32
      $region31: #{tpu_custom_call.1} parent=11 // pred_region
        _
      $region32: #{tpu_custom_call.1} parent=11 // pred_fallthru
        _
      // Predicated region
      $region33: #{tpu_custom_call.1} parent=11 // pred_check
        %p237 = pneg %p179
      $region34: #{tpu_custom_call.1} parent=11 // pred_check_branch
        %239 = sbr.rel (%p237) target = $region36
      $region35: #{tpu_custom_call.1} parent=11 // pred_region
        _
      $region36: #{tpu_custom_call.1} parent=11 // pred_fallthru
        _
    $region12: #{tpu_custom_call.1} parent=5 // pred_fallthru
      _
    %p240 = scmp.lt.s32.totalorder %s13, 2
    // Predicated region
    $region37: #{tpu_custom_call.1} parent=5 // pred_check
      %p241 = pneg %p240
    $region38: #{tpu_custom_call.1} parent=5 // pred_check_branch
      %243 = sbr.rel (%p241) target = $region40
    $region39: #{tpu_custom_call.1} parent=5 // pred_region
      // Predicated region
      $region41: #{tpu_custom_call.1} parent=39 // pred_check
        %p244 = pneg %p47
      $region42: #{tpu_custom_call.1} parent=39 // pred_check_branch
        %246 = sbr.rel (%p244) target = $region44
      $region43: #{tpu_custom_call.1} parent=39 // pred_region
        %p247 = scmp.lt.s32.totalorder %s20, 1
        %s248 = scalar_select %p247, %s20, 1
        %p249 = scmp.lt.s32.totalorder %s21, 0
        %s250 = scalar_select %p249, %s21, 0
        %s251 = smul.addr %s248, 4
        %s252 = sadd.s32 %s250, %s251
        %s253 = smul.addr %s252, 8
        %s254 = scalar_lea.vmem %s0, %s253
      $region44: #{tpu_custom_call.1} parent=39 // pred_fallthru
        _
    $region40: #{tpu_custom_call.1} parent=5 // pred_fallthru
      _
    %p255 = scmp.le.s32.totalorder 1, %s13
    %p256 = scmp.lt.s32.totalorder %s13, 3
    %p257 = pnand %p255, %p256
    %p258 = pneg %p257
    // Predicated region
    $region45: #{tpu_custom_call.1} parent=5 // pred_check
      _
    $region46: #{tpu_custom_call.1} parent=5 // pred_check_branch
      %260 = sbr.rel (%p257) target = $region48
    $region47: #{tpu_custom_call.1} parent=5 // pred_region
      %s261 = ssub.s32 %s13, 1
      %p262 = scmp.lt.s32.totalorder %s22, 1
      %s263 = scalar_select %p262, %s22, 1
      %p264 = scmp.lt.s32.totalorder %s23, 0
      %s265 = scalar_select %p264, %s23, 0
      %s266 = smul.addr %s263, 4
      %s267 = sadd.s32 %s265, %s266
      %s268 = smul.addr %s267, 8
      %s269 = scalar_lea.vmem %s0, %s268
      %p270 = pneg %p53
      %p271 = pneg %p50
      %p272 = pneg %p74
      %p273 = pneg %p71
      %p274 = pneg %p95
      %p275 = pneg %p92
      %p276 = pneg %p116
      %p277 = pneg %p113
      %p278 = pneg %p137
      %p279 = pneg %p134
      %p280 = pneg %p158
      %p281 = pneg %p155
      %p282 = pneg %p179
      %p283 = pneg %p176
      %p284 = pneg %p207
      %p285 = pneg %p204
      %p286 = scmp.lt.s32.totalorder %s22, 1
      %s287 = scalar_select %p286, %s22, 1
      %p288 = scmp.lt.s32.totalorder %s23, 0
      %s289 = scalar_select %p288, %s23, 0
      %s290 = smul.addr %s287, 10
      %s291 = sadd.s32 %s289, %s290
      %s292 = smul.addr %s291, 8
      %s293 = scalar_lea.vmem %s7, %s292
      %p294 = scmp.lt.s32.totalorder %s22, 1
      %s295 = scalar_select %p294, %s22, 1
      %p296 = scmp.lt.s32.totalorder %s23, 0
      %s297 = scalar_select %p296, %s23, 0
      %s298 = smul.addr %s295, 4
      %s299 = sadd.s32 %s297, %s298
      %s300 = smul.addr %s299, 8
      %s301 = scalar_lea.vmem %s0, %s300
      %p302 = scmp.lt.s32.totalorder %s22, 1
      %s303 = scalar_select %p302, %s22, 1
      %p304 = scmp.lt.s32.totalorder %s23, 0
      %s305 = scalar_select %p304, %s23, 0
      %s306 = smul.addr %s303, 10
      %s307 = sadd.s32 %s305, %s306
      %s308 = smul.addr %s307, 8
      %s309 = scalar_lea.vmem %s7, %s308
      %v310 = vld [vmem:[%s301] sm:$0xff]
      %v311 = vld [vmem:[%s301 + $0x8] sm:$0xff]
      %v312 = vld [vmem:[%s301 + $0x10] sm:$0xff]
      %v313 = vld [vmem:[%s301 + $0x18] sm:$0xff]
      %v314 = vld [vmem:[%s1] sm:$0xff]
      %v315 = vld [vmem:[%s1 + $0x8] sm:$0xff]
      %v316 = vld [vmem:[%s1 + $0x10] sm:$0xff]
      %v317 = vld [vmem:[%s1 + $0x18] sm:$0xff]
      %v318 = vld [vmem:[%s1 + $0x20] sm:$0xff]
      %v319 = vld [vmem:[%s1 + $0x28] sm:$0xff]
      %v320 = vld [vmem:[%s1 + $0x30] sm:$0xff]
      %v321 = vld [vmem:[%s1 + $0x38] sm:$0xff]
      %v322 = vld [vmem:[%s2] sm:$0xff]
      %v323 = vld [vmem:[%s2 + $0x8] sm:$0xff]
      %v324 = vld [vmem:[%s2 + $0x10] sm:$0xff]
      %v325 = vld [vmem:[%s2 + $0x18] sm:$0xff]
      %v326 = vld [vmem:[%s2 + $0x20] sm:$0xff]
      %v327 = vld [vmem:[%s2 + $0x28] sm:$0xff]
      %v328 = vld [vmem:[%s2 + $0x30] sm:$0xff]
      %v329 = vld [vmem:[%s2 + $0x38] sm:$0xff]
      %331 = vset.pattern.permute.xlu0 0
      %332 = vperm.xlu0 %331, %v322
      %v333 = vpop.permute.xlu0 %332
      %336 = vset.pattern.permute.xlu0 0
      %337 = vperm.xlu0 %336, %v323
      %v338 = vpop.permute.xlu0 %337
      %341 = vset.pattern.permute.xlu0 0
      %342 = vperm.xlu0 %341, %v324
      %v343 = vpop.permute.xlu0 %342
      %346 = vset.pattern.permute.xlu0 0
      %347 = vperm.xlu0 %346, %v325
      %v348 = vpop.permute.xlu0 %347
      %351 = vset.pattern.permute.xlu0 0
      %352 = vperm.xlu0 %351, %v326
      %v353 = vpop.permute.xlu0 %352
      %356 = vset.pattern.permute.xlu0 0
      %357 = vperm.xlu0 %356, %v327
      %v358 = vpop.permute.xlu0 %357
      %361 = vset.pattern.permute.xlu0 0
      %362 = vperm.xlu0 %361, %v328
      %v363 = vpop.permute.xlu0 %362
      %366 = vset.pattern.permute.xlu0 0
      %367 = vperm.xlu0 %366, %v329
      %v368 = vpop.permute.xlu0 %367
      %vm370 = vcmask 261120
      %v372 = vsel %vm370, %v314, 0
      %v375 = vsel %vm370, %v315, 0
      %v378 = vsel %vm370, %v316, 0
      %v381 = vsel %vm370, %v317, 0
      %v384 = vsel %vm370, %v318, 0
      %v387 = vsel %vm370, %v319, 0
      %v390 = vsel %vm370, %v320, 0
      %v393 = vsel %vm370, %v321, 0
      %395 = vmatprep.subr.mxu0 0.0
      %396 = vmatpush1.msra.mxu0 0.0
      %397 = vmatprep.subr.mxu0 0.0
      %398 = vmatpush1.msra.mxu0 0.0
      %399 = vmatprep.subr.mxu0 0.0
      %400 = vmatpush1.msra.mxu0 0.0
      %401 = vmatprep.subr.mxu0 0.0
      %402 = vmatpush1.msra.mxu0 0.0
      %403 = vmatprep.subr.mxu0 0.0
      %404 = vmatpush1.msra.mxu0 0.0
      %405 = vmatprep.subr.mxu0 0.0
      %406 = vmatpush1.msra.mxu0 0.0
      %407 = vmatprep.subr.mxu0 0.0
      %408 = vmatpush1.msra.mxu0 0.0
      %409 = vmatprep.subr.mxu0 0.0
      %410 = vmatpush1.msra.mxu0 0.0
      %411 = vmatprep.subr.mxu0 0.0
      %412 = vmatpush1.msra.mxu0 0.0
      %413 = vmatprep.subr.mxu0 0.0
      %414 = vmatpush1.msra.mxu0 0.0
      %415 = vmatprep.subr.mxu0 0.0
      %416 = vmatpush1.msra.mxu0 0.0
      %417 = vmatprep.subr.mxu0 0.0
      %418 = vmatpush1.msra.mxu0 0.0
      %419 = vmatprep.subr.mxu0 0.0
      %420 = vmatpush1.msra.mxu0 %v313
      %421 = vmatprep.subr.mxu0 0.0
      %422 = vmatpush1.msra.mxu0 %v312
      %423 = vmatprep.subr.mxu0 0.0
      %424 = vmatpush1.msra.mxu0 %v311
      %425 = vmatprep.subr.mxu0 0.0
      %426 = vmatpush1.msra.mxu0 %v310
      %427 = vmatprep.subr.mxu0 0.0
      %428 = vmatpush2.msra.mxu0 0.0
      %429 = vmatprep.subr.mxu0 0.0
      %430 = vmatpush2.msra.mxu0 0.0
      %431 = vmatprep.subr.mxu0 0.0
      %432 = vmatpush2.msra.mxu0 0.0
      %433 = vmatprep.subr.mxu0 0.0
      %434 = vmatpush2.msra.mxu0 0.0
      %435 = vmatprep.subr.mxu0 0.0
      %436 = vmatpush2.msra.mxu0 0.0
      %437 = vmatprep.subr.mxu0 0.0
      %438 = vmatpush2.msra.mxu0 0.0
      %439 = vmatprep.subr.mxu0 0.0
      %440 = vmatpush2.msra.mxu0 0.0
      %441 = vmatprep.subr.mxu0 0.0
      %442 = vmatpush2.msra.mxu0 0.0
      %443 = vmatprep.subr.mxu0 0.0
      %444 = vmatpush2.msra.mxu0 0.0
      %445 = vmatprep.subr.mxu0 0.0
      %446 = vmatpush2.msra.mxu0 0.0
      %447 = vmatprep.subr.mxu0 0.0
      %448 = vmatpush2.msra.mxu0 0.0
      %449 = vmatprep.subr.mxu0 0.0
      %450 = vmatpush2.msra.mxu0 0.0
      %451 = vmatprep.subr.mxu0 0.0
      %452 = vmatpush2.msra.mxu0 0.0
      %453 = vmatprep.subr.mxu0 0.0
      %454 = vmatpush2.msra.mxu0 0.0
      %455 = vmatprep.subr.mxu0 0.0
      %456 = vmatpush2.msra.mxu0 0.0
      %457 = vmatprep.subr.mxu0 0.0
      %458 = vmatpush2.msra.mxu0 0.0
      %459 = vmatprep.mubr.f32.mxu0 0.0
      %460 = vmatmul.mubr.f32.gmra.mxu0 %v372
      %v461 = vpop.f32.mrf.mxu0
      %v462 = vadd.f32 %v333, %v461
      %v463 = vpop.f32.mrf.mxu0
      %464 = vmatprep.mubr.f32.mxu0 0.0
      %465 = vmatmul.mubr.f32.gmra.mxu0 %v375
      %v466 = vpop.f32.mrf.mxu0
      %v467 = vadd.f32 %v338, %v466
      %v468 = vpop.f32.mrf.mxu0
      %469 = vmatprep.mubr.f32.mxu0 0.0
      %470 = vmatmul.mubr.f32.gmra.mxu0 %v378
      %v471 = vpop.f32.mrf.mxu0
      %v472 = vadd.f32 %v343, %v471
      %v473 = vpop.f32.mrf.mxu0
      %474 = vmatprep.mubr.f32.mxu0 0.0
      %475 = vmatmul.mubr.f32.gmra.mxu0 %v381
      %v476 = vpop.f32.mrf.mxu0
      %v477 = vadd.f32 %v348, %v476
      %v478 = vpop.f32.mrf.mxu0
      %479 = vmatprep.mubr.f32.mxu0 0.0
      %480 = vmatmul.mubr.f32.gmra.mxu0 %v384
      %v481 = vpop.f32.mrf.mxu0
      %v482 = vadd.f32 %v353, %v481
      %v483 = vpop.f32.mrf.mxu0
      %484 = vmatprep.mubr.f32.mxu0 0.0
      %485 = vmatmul.mubr.f32.gmra.mxu0 %v387
      %v486 = vpop.f32.mrf.mxu0
      %v487 = vadd.f32 %v358, %v486
      %v488 = vpop.f32.mrf.mxu0
      %489 = vmatprep.mubr.f32.mxu0 0.0
      %490 = vmatmul.mubr.f32.gmra.mxu0 %v390
      %v491 = vpop.f32.mrf.mxu0
      %v492 = vadd.f32 %v363, %v491
      %v493 = vpop.f32.mrf.mxu0
      %494 = vmatprep.mubr.f32.mxu0 0.0
      %495 = vmatmul.mubr.f32.gmra.mxu0 %v393
      %v496 = vpop.f32.mrf.mxu0
      %v497 = vadd.f32 %v368, %v496
      %v498 = vpop.f32.mrf.mxu0
      %499 = vdwg.mxu0
      %v500 = vmax.f32 %v462, 0.0
      %v501 = vmax.f32 %v467, 0.0
      %v502 = vmax.f32 %v472, 0.0
      %v503 = vmax.f32 %v477, 0.0
      %v504 = vmax.f32 %v482, 0.0
      %v505 = vmax.f32 %v487, 0.0
      %v506 = vmax.f32 %v492, 0.0
      %v507 = vmax.f32 %v497, 0.0
      %v508 = vld [vmem:[%s3] sm:$0xff]
      %v509 = vld [vmem:[%s3 + $0x8] sm:$0xff]
      %v510 = vld [vmem:[%s3 + $0x10] sm:$0xff]
      %v511 = vld [vmem:[%s3 + $0x18] sm:$0xff]
      %v512 = vld [vmem:[%s3 + $0x20] sm:$0xff]
      %v513 = vld [vmem:[%s3 + $0x28] sm:$0xff]
      %v514 = vld [vmem:[%s3 + $0x30] sm:$0xff]
      %v515 = vld [vmem:[%s3 + $0x38] sm:$0xff]
      %v516 = vld [vmem:[%s4] sm:$0xff]
      %v517 = vld [vmem:[%s4 + $0x8] sm:$0xff]
      %v518 = vld [vmem:[%s4 + $0x10] sm:$0xff]
      %v519 = vld [vmem:[%s4 + $0x18] sm:$0xff]
      %v520 = vld [vmem:[%s4 + $0x20] sm:$0xff]
      %v521 = vld [vmem:[%s4 + $0x28] sm:$0xff]
      %v522 = vld [vmem:[%s4 + $0x30] sm:$0xff]
      %v523 = vld [vmem:[%s4 + $0x38] sm:$0xff]
      %525 = vset.pattern.permute.xlu0 0
      %526 = vperm.xlu0 %525, %v516
      %v527 = vpop.permute.xlu0 %526
      %530 = vset.pattern.permute.xlu0 0
      %531 = vperm.xlu0 %530, %v517
      %v532 = vpop.permute.xlu0 %531
      %535 = vset.pattern.permute.xlu0 0
      %536 = vperm.xlu0 %535, %v518
      %v537 = vpop.permute.xlu0 %536
      %540 = vset.pattern.permute.xlu0 0
      %541 = vperm.xlu0 %540, %v519
      %v542 = vpop.permute.xlu0 %541
      %545 = vset.pattern.permute.xlu0 0
      %546 = vperm.xlu0 %545, %v520
      %v547 = vpop.permute.xlu0 %546
      %550 = vset.pattern.permute.xlu0 0
      %551 = vperm.xlu0 %550, %v521
      %v552 = vpop.permute.xlu0 %551
      %555 = vset.pattern.permute.xlu0 0
      %556 = vperm.xlu0 %555, %v522
      %v557 = vpop.permute.xlu0 %556
      %560 = vset.pattern.permute.xlu0 0
      %561 = vperm.xlu0 %560, %v523
      %v562 = vpop.permute.xlu0 %561
      %vm564 = vcmask 523264
      %v566 = vsel %vm564, %v508, 0
      %v569 = vsel %vm564, %v509, 0
      %v572 = vsel %vm564, %v510, 0
      %v575 = vsel %vm564, %v511, 0
      %v578 = vsel %vm564, %v512, 0
      %v581 = vsel %vm564, %v513, 0
      %v584 = vsel %vm564, %v514, 0
      %v587 = vsel %vm564, %v515, 0
      %589 = vmatprep.subr.mxu0 0.0
      %590 = vmatpush1.msra.mxu0 0.0
      %591 = vmatprep.subr.mxu0 0.0
      %592 = vmatpush1.msra.mxu0 0.0
      %593 = vmatprep.subr.mxu0 0.0
      %594 = vmatpush1.msra.mxu0 0.0
      %595 = vmatprep.subr.mxu0 0.0
      %596 = vmatpush1.msra.mxu0 0.0
      %597 = vmatprep.subr.mxu0 0.0
      %598 = vmatpush1.msra.mxu0 0.0
      %599 = vmatprep.subr.mxu0 0.0
      %600 = vmatpush1.msra.mxu0 0.0
      %601 = vmatprep.subr.mxu0 0.0
      %602 = vmatpush1.msra.mxu0 0.0
      %603 = vmatprep.subr.mxu0 0.0
      %604 = vmatpush1.msra.mxu0 0.0
      %605 = vmatprep.subr.mxu0 0.0
      %606 = vmatpush1.msra.mxu0 %v507
      %607 = vmatprep.subr.mxu0 0.0
      %608 = vmatpush1.msra.mxu0 %v506
      %609 = vmatprep.subr.mxu0 0.0
      %610 = vmatpush1.msra.mxu0 %v505
      %611 = vmatprep.subr.mxu0 0.0
      %612 = vmatpush1.msra.mxu0 %v504
      %613 = vmatprep.subr.mxu0 0.0
      %614 = vmatpush1.msra.mxu0 %v503
      %615 = vmatprep.subr.mxu0 0.0
      %616 = vmatpush1.msra.mxu0 %v502
      %617 = vmatprep.subr.mxu0 0.0
      %618 = vmatpush1.msra.mxu0 %v501
      %619 = vmatprep.subr.mxu0 0.0
      %620 = vmatpush1.msra.mxu0 %v500
      %621 = vmatprep.subr.mxu0 0.0
      %622 = vmatpush2.msra.mxu0 0.0
      %623 = vmatprep.subr.mxu0 0.0
      %624 = vmatpush2.msra.mxu0 0.0
      %625 = vmatprep.subr.mxu0 0.0
      %626 = vmatpush2.msra.mxu0 0.0
      %627 = vmatprep.subr.mxu0 0.0
      %628 = vmatpush2.msra.mxu0 0.0
      %629 = vmatprep.subr.mxu0 0.0
      %630 = vmatpush2.msra.mxu0 0.0
      %631 = vmatprep.subr.mxu0 0.0
      %632 = vmatpush2.msra.mxu0 0.0
      %633 = vmatprep.subr.mxu0 0.0
      %634 = vmatpush2.msra.mxu0 0.0
      %635 = vmatprep.subr.mxu0 0.0
      %636 = vmatpush2.msra.mxu0 0.0
      %637 = vmatprep.subr.mxu0 0.0
      %638 = vmatpush2.msra.mxu0 0.0
      %639 = vmatprep.subr.mxu0 0.0
      %640 = vmatpush2.msra.mxu0 0.0
      %641 = vmatprep.subr.mxu0 0.0
      %642 = vmatpush2.msra.mxu0 0.0
      %643 = vmatprep.subr.mxu0 0.0
      %644 = vmatpush2.msra.mxu0 0.0
      %645 = vmatprep.subr.mxu0 0.0
      %646 = vmatpush2.msra.mxu0 0.0
      %647 = vmatprep.subr.mxu0 0.0
      %648 = vmatpush2.msra.mxu0 0.0
      %649 = vmatprep.subr.mxu0 0.0
      %650 = vmatpush2.msra.mxu0 0.0
      %651 = vmatprep.subr.mxu0 0.0
      %652 = vmatpush2.msra.mxu0 0.0
      %653 = vmatprep.mubr.f32.mxu0 0.0
      %654 = vmatmul.mubr.f32.gmra.mxu0 %v566
      %v655 = vpop.f32.mrf.mxu0
      %v656 = vadd.f32 %v527, %v655
      %v657 = vpop.f32.mrf.mxu0
      %658 = vmatprep.mubr.f32.mxu0 0.0
      %659 = vmatmul.mubr.f32.gmra.mxu0 %v569
      %v660 = vpop.f32.mrf.mxu0
      %v661 = vadd.f32 %v532, %v660
      %v662 = vpop.f32.mrf.mxu0
      %663 = vmatprep.mubr.f32.mxu0 0.0
      %664 = vmatmul.mubr.f32.gmra.mxu0 %v572
      %v665 = vpop.f32.mrf.mxu0
      %v666 = vadd.f32 %v537, %v665
      %v667 = vpop.f32.mrf.mxu0
      %668 = vmatprep.mubr.f32.mxu0 0.0
      %669 = vmatmul.mubr.f32.gmra.mxu0 %v575
      %v670 = vpop.f32.mrf.mxu0
      %v671 = vadd.f32 %v542, %v670
      %v672 = vpop.f32.mrf.mxu0
      %673 = vmatprep.mubr.f32.mxu0 0.0
      %674 = vmatmul.mubr.f32.gmra.mxu0 %v578
      %v675 = vpop.f32.mrf.mxu0
      %v676 = vadd.f32 %v547, %v675
      %v677 = vpop.f32.mrf.mxu0
      %678 = vmatprep.mubr.f32.mxu0 0.0
      %679 = vmatmul.mubr.f32.gmra.mxu0 %v581
      %v680 = vpop.f32.mrf.mxu0
      %v681 = vadd.f32 %v552, %v680
      %v682 = vpop.f32.mrf.mxu0
      %683 = vmatprep.mubr.f32.mxu0 0.0
      %684 = vmatmul.mubr.f32.gmra.mxu0 %v584
      %v685 = vpop.f32.mrf.mxu0
      %v686 = vadd.f32 %v557, %v685
      %v687 = vpop.f32.mrf.mxu0
      %688 = vmatprep.mubr.f32.mxu0 0.0
      %689 = vmatmul.mubr.f32.gmra.mxu0 %v587
      %v690 = vpop.f32.mrf.mxu0
      %v691 = vadd.f32 %v562, %v690
      %v692 = vpop.f32.mrf.mxu0
      %693 = vdwg.mxu0
      %v694 = vmax.f32 %v656, 0.0
      %v695 = vmax.f32 %v661, 0.0
      %v696 = vmax.f32 %v666, 0.0
      %v697 = vmax.f32 %v671, 0.0
      %v698 = vmax.f32 %v676, 0.0
      %v699 = vmax.f32 %v681, 0.0
      %v700 = vmax.f32 %v686, 0.0
      %v701 = vmax.f32 %v691, 0.0
      %v702 = vld [vmem:[%s5] sm:$0xff]
      %v703 = vld [vmem:[%s5 + $0x8] sm:$0xff]
      %v704 = vld [vmem:[%s5 + $0x10] sm:$0xff]
      %v705 = vld [vmem:[%s5 + $0x18] sm:$0xff]
      %v706 = vld [vmem:[%s5 + $0x20] sm:$0xff]
      %v707 = vld [vmem:[%s5 + $0x28] sm:$0xff]
      %v708 = vld [vmem:[%s5 + $0x30] sm:$0xff]
      %v709 = vld [vmem:[%s5 + $0x38] sm:$0xff]
      %v710 = vld [vmem:[%s5 + $0x40] sm:$0xff]
      %v711 = vld [vmem:[%s5 + $0x48] sm:$0xff]
      %v712 = vld [vmem:[%s6] sm:$0xff]
      %v713 = vld [vmem:[%s6 + $0x8] sm:$0xff]
      %v714 = vld [vmem:[%s6 + $0x10] sm:$0xff]
      %v715 = vld [vmem:[%s6 + $0x18] sm:$0xff]
      %v716 = vld [vmem:[%s6 + $0x20] sm:$0xff]
      %v717 = vld [vmem:[%s6 + $0x28] sm:$0xff]
      %v718 = vld [vmem:[%s6 + $0x30] sm:$0xff]
      %v719 = vld [vmem:[%s6 + $0x38] sm:$0xff]
      %v720 = vld [vmem:[%s6 + $0x40] sm:$0xff]
      %v721 = vld [vmem:[%s6 + $0x48] sm:$0xff]
      %723 = vset.pattern.permute.xlu0 0
      %724 = vperm.xlu0 %723, %v712
      %v725 = vpop.permute.xlu0 %724
      %728 = vset.pattern.permute.xlu0 0
      %729 = vperm.xlu0 %728, %v713
      %v730 = vpop.permute.xlu0 %729
      %733 = vset.pattern.permute.xlu0 0
      %734 = vperm.xlu0 %733, %v714
      %v735 = vpop.permute.xlu0 %734
      %738 = vset.pattern.permute.xlu0 0
      %739 = vperm.xlu0 %738, %v715
      %v740 = vpop.permute.xlu0 %739
      %743 = vset.pattern.permute.xlu0 0
      %744 = vperm.xlu0 %743, %v716
      %v745 = vpop.permute.xlu0 %744
      %748 = vset.pattern.permute.xlu0 0
      %749 = vperm.xlu0 %748, %v717
      %v750 = vpop.permute.xlu0 %749
      %753 = vset.pattern.permute.xlu0 0
      %754 = vperm.xlu0 %753, %v718
      %v755 = vpop.permute.xlu0 %754
      %758 = vset.pattern.permute.xlu0 0
      %759 = vperm.xlu0 %758, %v719
      %v760 = vpop.permute.xlu0 %759
      %763 = vset.pattern.permute.xlu0 0
      %764 = vperm.xlu0 %763, %v720
      %v765 = vpop.permute.xlu0 %764
      %768 = vset.pattern.permute.xlu0 0
      %769 = vperm.xlu0 %768, %v721
      %v770 = vpop.permute.xlu0 %769
      %v773 = vsel %vm564, %v702, 0
      %v776 = vsel %vm564, %v703, 0
      %v779 = vsel %vm564, %v704, 0
      %v782 = vsel %vm564, %v705, 0
      %v785 = vsel %vm564, %v706, 0
      %v788 = vsel %vm564, %v707, 0
      %v791 = vsel %vm564, %v708, 0
      %v794 = vsel %vm564, %v709, 0
      %v797 = vsel %vm564, %v710, 0
      %v800 = vsel %vm564, %v711, 0
      %802 = vmatprep.subr.mxu0 0.0
      %803 = vmatpush1.msra.mxu0 0.0
      %804 = vmatprep.subr.mxu0 0.0
      %805 = vmatpush1.msra.mxu0 0.0
      %806 = vmatprep.subr.mxu0 0.0
      %807 = vmatpush1.msra.mxu0 0.0
      %808 = vmatprep.subr.mxu0 0.0
      %809 = vmatpush1.msra.mxu0 0.0
      %810 = vmatprep.subr.mxu0 0.0
      %811 = vmatpush1.msra.mxu0 0.0
      %812 = vmatprep.subr.mxu0 0.0
      %813 = vmatpush1.msra.mxu0 0.0
      %814 = vmatprep.subr.mxu0 0.0
      %815 = vmatpush1.msra.mxu0 0.0
      %816 = vmatprep.subr.mxu0 0.0
      %817 = vmatpush1.msra.mxu0 0.0
      %818 = vmatprep.subr.mxu0 0.0
      %819 = vmatpush1.msra.mxu0 %v701
      %820 = vmatprep.subr.mxu0 0.0
      %821 = vmatpush1.msra.mxu0 %v700
      %822 = vmatprep.subr.mxu0 0.0
      %823 = vmatpush1.msra.mxu0 %v699
      %824 = vmatprep.subr.mxu0 0.0
      %825 = vmatpush1.msra.mxu0 %v698
      %826 = vmatprep.subr.mxu0 0.0
      %827 = vmatpush1.msra.mxu0 %v697
      %828 = vmatprep.subr.mxu0 0.0
      %829 = vmatpush1.msra.mxu0 %v696
      %830 = vmatprep.subr.mxu0 0.0
      %831 = vmatpush1.msra.mxu0 %v695
      %832 = vmatprep.subr.mxu0 0.0
      %833 = vmatpush1.msra.mxu0 %v694
      %834 = vmatprep.subr.mxu0 0.0
      %835 = vmatpush2.msra.mxu0 0.0
      %836 = vmatprep.subr.mxu0 0.0
      %837 = vmatpush2.msra.mxu0 0.0
      %838 = vmatprep.subr.mxu0 0.0
      %839 = vmatpush2.msra.mxu0 0.0
      %840 = vmatprep.subr.mxu0 0.0
      %841 = vmatpush2.msra.mxu0 0.0
      %842 = vmatprep.subr.mxu0 0.0
      %843 = vmatpush2.msra.mxu0 0.0
      %844 = vmatprep.subr.mxu0 0.0
      %845 = vmatpush2.msra.mxu0 0.0
      %846 = vmatprep.subr.mxu0 0.0
      %847 = vmatpush2.msra.mxu0 0.0
      %848 = vmatprep.subr.mxu0 0.0
      %849 = vmatpush2.msra.mxu0 0.0
      %850 = vmatprep.subr.mxu0 0.0
      %851 = vmatpush2.msra.mxu0 0.0
      %852 = vmatprep.subr.mxu0 0.0
      %853 = vmatpush2.msra.mxu0 0.0
      %854 = vmatprep.subr.mxu0 0.0
      %855 = vmatpush2.msra.mxu0 0.0
      %856 = vmatprep.subr.mxu0 0.0
      %857 = vmatpush2.msra.mxu0 0.0
      %858 = vmatprep.subr.mxu0 0.0
      %859 = vmatpush2.msra.mxu0 0.0
      %860 = vmatprep.subr.mxu0 0.0
      %861 = vmatpush2.msra.mxu0 0.0
      %862 = vmatprep.subr.mxu0 0.0
      %863 = vmatpush2.msra.mxu0 0.0
      %864 = vmatprep.subr.mxu0 0.0
      %865 = vmatpush2.msra.mxu0 0.0
      %866 = vmatprep.mubr.f32.mxu0 0.0
      %867 = vmatmul.mubr.f32.gmra.mxu0 %v773
      %v868 = vpop.f32.mrf.mxu0
      %v869 = vadd.f32 %v725, %v868
      %v870 = vpop.f32.mrf.mxu0
      %871 = vmatprep.mubr.f32.mxu0 0.0
      %872 = vmatmul.mubr.f32.gmra.mxu0 %v776
      %v873 = vpop.f32.mrf.mxu0
      %v874 = vadd.f32 %v730, %v873
      %v875 = vpop.f32.mrf.mxu0
      %876 = vmatprep.mubr.f32.mxu0 0.0
      %877 = vmatmul.mubr.f32.gmra.mxu0 %v779
      %v878 = vpop.f32.mrf.mxu0
      %v879 = vadd.f32 %v735, %v878
      %v880 = vpop.f32.mrf.mxu0
      %881 = vmatprep.mubr.f32.mxu0 0.0
      %882 = vmatmul.mubr.f32.gmra.mxu0 %v782
      %v883 = vpop.f32.mrf.mxu0
      %v884 = vadd.f32 %v740, %v883
      %v885 = vpop.f32.mrf.mxu0
      %886 = vmatprep.mubr.f32.mxu0 0.0
      %887 = vmatmul.mubr.f32.gmra.mxu0 %v785
      %v888 = vpop.f32.mrf.mxu0
      %v889 = vadd.f32 %v745, %v888
      %v890 = vpop.f32.mrf.mxu0
      %891 = vmatprep.mubr.f32.mxu0 0.0
      %892 = vmatmul.mubr.f32.gmra.mxu0 %v788
      %v893 = vpop.f32.mrf.mxu0
      %v894 = vadd.f32 %v750, %v893
      %v895 = vpop.f32.mrf.mxu0
      %896 = vmatprep.mubr.f32.mxu0 0.0
      %897 = vmatmul.mubr.f32.gmra.mxu0 %v791
      %v898 = vpop.f32.mrf.mxu0
      %v899 = vadd.f32 %v755, %v898
      %v900 = vpop.f32.mrf.mxu0
      %901 = vmatprep.mubr.f32.mxu0 0.0
      %902 = vmatmul.mubr.f32.gmra.mxu0 %v794
      %v903 = vpop.f32.mrf.mxu0
      %v904 = vadd.f32 %v760, %v903
      %v905 = vpop.f32.mrf.mxu0
      %906 = vmatprep.mubr.f32.mxu0 0.0
      %907 = vmatmul.mubr.f32.gmra.mxu0 %v797
      %v908 = vpop.f32.mrf.mxu0
      %v909 = vadd.f32 %v765, %v908
      %v910 = vpop.f32.mrf.mxu0
      %911 = vmatprep.mubr.f32.mxu0 0.0
      %912 = vmatmul.mubr.f32.gmra.mxu0 %v800
      %v913 = vpop.f32.mrf.mxu0
      %v914 = vadd.f32 %v770, %v913
      %v915 = vpop.f32.mrf.mxu0
      %916 = vdwg.mxu0
      %vm917 = vcmask 130048
      %918 = vst.msk [vmem:[%s309] sm:$0xff] %vm917, %v869
      %919 = vst.msk [vmem:[%s309 + $0x8] sm:$0xff] %vm917, %v874
      %920 = vst.msk [vmem:[%s309 + $0x10] sm:$0xff] %vm917, %v879
      %921 = vst.msk [vmem:[%s309 + $0x18] sm:$0xff] %vm917, %v884
      %922 = vst.msk [vmem:[%s309 + $0x20] sm:$0xff] %vm917, %v889
      %923 = vst.msk [vmem:[%s309 + $0x28] sm:$0xff] %vm917, %v894
      %924 = vst.msk [vmem:[%s309 + $0x30] sm:$0xff] %vm917, %v899
      %925 = vst.msk [vmem:[%s309 + $0x38] sm:$0xff] %vm917, %v904
      %926 = vst.msk [vmem:[%s309 + $0x40] sm:$0xff] %vm917, %v909
      %927 = vst.msk [vmem:[%s309 + $0x48] sm:$0xff] %vm917, %v914
      %p928 = scmp.lt.s32.totalorder %s22, 1
      %s929 = scalar_select %p928, %s22, 1
      %p930 = scmp.lt.s32.totalorder %s23, 0
      %s931 = scalar_select %p930, %s23, 0
      %s932 = smul.addr %s929, 10
      %s933 = sadd.s32 %s931, %s932
      %s934 = smul.addr %s933, 8
      %s935 = scalar_lea.vmem %s7, %s934
      // Predicated region
      $region49: #{tpu_custom_call.1} parent=47 // pred_check
        %p936 = pneg %p204
      $region50: #{tpu_custom_call.1} parent=47 // pred_check_branch
        %938 = sbr.rel (%p936) target = $region52
      $region51: #{tpu_custom_call.1} parent=47 // pred_region
        _
      $region52: #{tpu_custom_call.1} parent=47 // pred_fallthru
        _
    $region48: #{tpu_custom_call.1} parent=5 // pred_fallthru
      _
    %p939 = scmp.le.s32.totalorder 2, %s13
    // Predicated region
    $region53: #{tpu_custom_call.1} parent=5 // pred_check
      %p940 = pneg %p939
    $region54: #{tpu_custom_call.1} parent=5 // pred_check_branch
      %942 = sbr.rel (%p940) target = $region56
    $region55: #{tpu_custom_call.1} parent=5 // pred_region
      %s943 = ssub.s32 %s13, 2
      // Predicated region
      $region57: #{tpu_custom_call.1} parent=55 // pred_check
        %p944 = pneg %p210
      $region58: #{tpu_custom_call.1} parent=55 // pred_check_branch
        %946 = sbr.rel (%p944) target = $region60
      $region59: #{tpu_custom_call.1} parent=55 // pred_region
        %p947 = scmp.lt.s32.totalorder %s24, 1
        %s948 = scalar_select %p947, %s24, 1
        %p949 = scmp.lt.s32.totalorder %s25, 0
        %s950 = scalar_select %p949, %s25, 0
        %s951 = smul.addr %s948, 10
        %s952 = sadd.s32 %s950, %s951
        %s953 = smul.addr %s952, 8
        %s954 = scalar_lea.vmem %s7, %s953
      $region60: #{tpu_custom_call.1} parent=55 // pred_fallthru
        _
    $region56: #{tpu_custom_call.1} parent=5 // pred_fallthru
      _
  $region6: #{tpu_custom_call.1} parent=0 // loop_footer
    %s17 = sadd.s32 1, %s13
  $region7: #{tpu_custom_call.1} parent=0 // loop_footer_branch
    %12 = sbr.rel target = $region3
  $region8: #{tpu_custom_call.1} parent=0 // loop_exit
    _

</llo_original>
